<compile_context>
chip_gen: v7x
topology: tpu7x:2x2x1
jax: 0.10.0
libtpu: 0.0.40
codegen_flags: <defaults>
</compile_context>

<pallas_src>
import functools

import jax
import jax.numpy as jnp
from jax.experimental import pallas as pl
from jax.experimental.pallas import tpu as pltpu

_EPS = 1e-5
K_CLS = 2  # number of classes predicted by tsm_* (fixed by the module: ConvModule(C, 2, 1))


# ----------------------------- kernel bodies --------------------------------

def _affine_relu(y, sb_ref):
    """y * scale + bias, then ReLU.  sb_ref rows: [scale; bias], shape (2, Cout)."""
    return jnp.maximum(y * sb_ref[0:1, :] + sb_ref[1:2, :], 0.0)


def _tsm_tsc_kernel(x_ref, wt_ref, sbt_ref, ctx_ref, m_sc, l_sc, acc_sc):
    """Fused tsm conv (+bias,+ReLU) and TSC: softmax over the spatial dim of the class
    predictions, then context[k] = sum_n softmax(pred)[n,k] * feats[n,:].

    Grid (B, N//TN), reduction over the spatial tiles with an online softmax
    (running max / running sum / running weighted-feature accumulator in scratch)."""
    n = pl.program_id(1)

    @pl.when(n == 0)
    def _init():
        m_sc[...] = jnp.full_like(m_sc, -jnp.inf)
        l_sc[...] = jnp.zeros_like(l_sc)
        acc_sc[...] = jnp.zeros_like(acc_sc)

    x = x_ref[0].astype(jnp.float32)                                    # (TN, C)
    pred = jnp.dot(x, wt_ref[...], preferred_element_type=jnp.float32)  # (TN, K)
    pred = jnp.maximum(pred * sbt_ref[0:1, :] + sbt_ref[1:2, :], 0.0)

    m_prev = m_sc[...]                                                  # (1, K)
    m_new = jnp.maximum(m_prev, jnp.max(pred, axis=0, keepdims=True))
    alpha = jnp.exp(m_prev - m_new)                                     # (1, K)
    p = jnp.exp(pred - m_new)                                           # (TN, K)
    l_sc[...] = alpha * l_sc[...] + jnp.sum(p, axis=0, keepdims=True)
    # per-class weighted feature sums on the VPU (no MXU pad waste, no transpose of x)
    for k in range(K_CLS):
        contrib = jnp.sum(p[:, k:k + 1] * x, axis=0, keepdims=True)     # (1, C)
        acc_sc[k:k + 1, :] = alpha[:, k:k + 1] * acc_sc[k:k + 1, :] + contrib
    m_sc[...] = m_new

    @pl.when(n == pl.num_programs(1) - 1)
    def _finish():
        inv_l = pl.reciprocal(l_sc[...], approx=True)                   # (1, K)
        rows = [acc_sc[k:k + 1, :] * inv_l[:, k:k + 1] for k in range(K_CLS)]
        ctx_ref[0] = jnp.concatenate(rows, axis=0).astype(ctx_ref.dtype)  # (K, C)


def _tsa_kernel(x_ref, ctx_ref,
                wq1, sbq1, wq2, sbq2,
                wk1, sbk1, wk2, sbk2,
                wv, sbv, wo, sbo,
                wbc, wbq, sbb,
                agg_ref, sum_ref, sum_sc, *, scale):
    """Fused TSA on one row tile of query feats:
       q = qp2(qp1(x)); k = kp2(kp1(ctx)); v = vp(ctx)
       sim = scale * q @ k^T; softmax over classes; attn = sim @ v
       ctx_out = out_proj(attn); y = bneck([ctx_out, x])  (concat eliminated via split W)
    Also accumulates the per-batch spatial sum of y for the global-average pool."""
    n = pl.program_id(1)

    def cbr(t, w_ref, sb_ref):  # 1x1 conv (no bias) + folded BN + ReLU
        return _affine_relu(
            jnp.dot(t, w_ref[...], preferred_element_type=jnp.float32), sb_ref)

    x = x_ref[0].astype(jnp.float32)                       # (TN, C)
    c = ctx_ref[0].astype(jnp.float32)                     # (K, C)

    q = cbr(cbr(x, wq1, sbq1), wq2, sbq2)                  # (TN, IC)
    k = cbr(cbr(c, wk1, sbk1), wk2, sbk2)                  # (K,  IC)
    v = cbr(c, wv, sbv)                                    # (K,  IC)

    # sim_j = scale * <q, k_j>  — K=2 classes: VPU broadcast-mul + lane reduce (no MXU).
    sims = [jnp.sum(q * k[j:j + 1, :], axis=1, keepdims=True) * scale
            for j in range(K_CLS)]                         # each (TN, 1)
    m = sims[0]
    for s in sims[1:]:
        m = jnp.maximum(m, s)
    es = [jnp.exp(s - m) for s in sims]
    denom = es[0]
    for e in es[1:]:
        denom = denom + e
    inv = pl.reciprocal(denom, approx=True)                # (TN, 1)

    # attn = softmax(sim) @ v  — contraction over K=2: VPU broadcast multiply-add.
    attn = (es[0] * inv) * v[0:1, :]
    for j in range(1, K_CLS):
        attn = attn + (es[j] * inv) * v[j:j + 1, :]        # (TN, IC)

    ctx_out = cbr(attn, wo, sbo)                           # (TN, C)

    # bottleneck on concat([ctx_out, x], channels) without materializing the concat.
    y = jnp.dot(ctx_out, wbc[...], preferred_element_type=jnp.float32)
    y = y + jnp.dot(x, wbq[...], preferred_element_type=jnp.float32)
    y = _affine_relu(y, sbb)                               # (TN, C)

    agg_ref[0] = y.astype(agg_ref.dtype)

    # running per-batch spatial sum (feeds AdaptiveAvgPool2d(1) of agg)
    @pl.when(n == 0)
    def _init():
        sum_sc[...] = jnp.zeros_like(sum_sc)
    sum_sc[...] += jnp.sum(y, axis=0, keepdims=True)

    @pl.when(n == pl.num_programs(1) - 1)
    def _finish():
        sum_ref[0] = sum_sc[...].astype(sum_ref.dtype)


def _la_chain(t, w1, cb1, nsb1, w2, cb2, nsb2):
    """conv1(+bias) -> ReLU -> BN1 -> ReLU -> conv2(+bias) -> ReLU -> BN2."""
    y = jnp.dot(t, w1[...], preferred_element_type=jnp.float32) + cb1[...]
    y = jnp.maximum(y, 0.0)
    y = y * nsb1[0:1, :] + nsb1[1:2, :]
    y = jnp.maximum(y, 0.0)
    y = jnp.dot(y, w2[...], preferred_element_type=jnp.float32) + cb2[...]
    y = jnp.maximum(y, 0.0)
    y = y * nsb2[0:1, :] + nsb2[1:2, :]
    return y


def _epilogue_kernel(bm_ref, fm_ref, pool_ref,
                     wl1, cbl1, nsbl1, wl2, cbl2, nsbl2,
                     wg1, cbg1, nsbg1, wg2, cbg2, nsbg2,
                     diff_ref):
    """agg = bm+fm; loc = LA(agg); glo = GA(pooled agg); w = sigmoid(loc+glo);
       diff = 2*bm*w + 2*fm*(1-w)."""
    bm = bm_ref[0].astype(jnp.float32)                     # (TN, C)
    fm = fm_ref[0].astype(jnp.float32)
    agg = bm + fm
    loc = _la_chain(agg, wl1, cbl1, nsbl1, wl2, cbl2, nsbl2)            # (TN, C)
    glo = _la_chain(pool_ref[0].astype(jnp.float32),
                    wg1, cbg1, nsbg1, wg2, cbg2, nsbg2)                 # (1, C)
    gate = loc + glo
    w = pl.reciprocal(1.0 + jnp.exp(-gate), approx=True)                # sigmoid (EUP)
    diff_ref[0] = (2.0 * bm * w + 2.0 * fm * (1.0 - w)).astype(diff_ref.dtype)


# ------------------------------ pallas wrappers -------------------------------

def _wspec(arr):
    """Replicated full-array block for a 2-D weight / affine operand."""
    return pl.BlockSpec(arr.shape, lambda b, n: (0, 0))


def tsm_tsc(x, w, sb, *, tn):
    """x: (B, N, C) -> class context (B, K, C)."""
    B, N, C = x.shape
    Kc = w.shape[1]
    return pl.pallas_call(
        _tsm_tsc_kernel,
        out_shape=jax.ShapeDtypeStruct((B, Kc, C), jnp.float32),
        grid_spec=pltpu.PrefetchScalarGridSpec(
            num_scalar_prefetch=0,
            grid=(B, N // tn),
            in_specs=[pl.BlockSpec((1, tn, C), lambda b, n: (b, n, 0)),
                      _wspec(w), _wspec(sb)],
            out_specs=pl.BlockSpec((1, Kc, C), lambda b, n: (b, 0, 0)),
            scratch_shapes=[pltpu.VMEM((1, Kc), jnp.float32),
                            pltpu.VMEM((1, Kc), jnp.float32),
                            pltpu.VMEM((Kc, C), jnp.float32)]),
        compiler_params=pltpu.CompilerParams(
            dimension_semantics=("parallel", "arbitrary")),
    )(x, w, sb)


def tsa(x, ctx, p, *, tn, ic):
    """x: (B, N, C) query feats, ctx: (B, K, C) -> (agg (B,N,C), spatial sum (B,1,C))."""
    B, N, C = x.shape
    Kc = ctx.shape[1]
    kern = functools.partial(_tsa_kernel, scale=float(ic) ** -0.5)
    weights = [p['qp1']['W'], p['qp1']['sb'], p['qp2']['W'], p['qp2']['sb'],
               p['kp1']['W'], p['kp1']['sb'], p['kp2']['W'], p['kp2']['sb'],
               p['vp']['W'], p['vp']['sb'], p['out']['W'], p['out']['sb'],
               p['bneck']['W'][:C, :], p['bneck']['W'][C:, :], p['bneck']['sb']]
    return pl.pallas_call(
        kern,
        out_shape=(jax.ShapeDtypeStruct((B, N, C), jnp.float32),
                   jax.ShapeDtypeStruct((B, 1, C), jnp.float32)),
        grid_spec=pltpu.PrefetchScalarGridSpec(
            num_scalar_prefetch=0,
            grid=(B, N // tn),
            in_specs=[pl.BlockSpec((1, tn, C), lambda b, n: (b, n, 0)),
                      pl.BlockSpec((1, Kc, C), lambda b, n: (b, 0, 0))]
                     + [_wspec(a) for a in weights],
            out_specs=(pl.BlockSpec((1, tn, C), lambda b, n: (b, n, 0)),
                       pl.BlockSpec((1, 1, C), lambda b, n: (b, 0, 0))),
            scratch_shapes=[pltpu.VMEM((1, C), jnp.float32)]),
        compiler_params=pltpu.CompilerParams(
            dimension_semantics=("parallel", "arbitrary")),
    )(x, ctx, *weights)


def epilogue(bm_agg, fm_agg, pooled, la_p, ga_p, *, tn):
    B, N, C = bm_agg.shape
    weights = [la_p['conv1']['W'], la_p['conv1']['cb'], la_p['bn1']['sb'],
               la_p['conv2']['W'], la_p['conv2']['cb'], la_p['bn2']['sb'],
               ga_p['conv1']['W'], ga_p['conv1']['cb'], ga_p['bn1']['sb'],
               ga_p['conv2']['W'], ga_p['conv2']['cb'], ga_p['bn2']['sb']]
    return pl.pallas_call(
        _epilogue_kernel,
        out_shape=jax.ShapeDtypeStruct((B, N, C), jnp.float32),
        grid_spec=pltpu.PrefetchScalarGridSpec(
            num_scalar_prefetch=0,
            grid=(B, N // tn),
            in_specs=[pl.BlockSpec((1, tn, C), lambda b, n: (b, n, 0)),
                      pl.BlockSpec((1, tn, C), lambda b, n: (b, n, 0)),
                      pl.BlockSpec((1, 1, C), lambda b, n: (b, 0, 0))]
                     + [_wspec(a) for a in weights],
            out_specs=pl.BlockSpec((1, tn, C), lambda b, n: (b, n, 0))),
        compiler_params=pltpu.CompilerParams(
            dimension_semantics=("parallel", "parallel")),
    )(bm_agg, fm_agg, pooled, *weights)


# --------------------------- parameter construction ---------------------------

def init_conv_bn(key, cin, cout):
    """ConvModule(cin, cout, 1, norm=BN, act=ReLU): conv (no bias) + folded BN affine."""
    kw, kg, kb = jax.random.split(key, 3)
    W = jax.random.normal(kw, (cin, cout), jnp.float32) / (float(cin) ** 0.5)
    gamma = 1.0 + 0.1 * jax.random.normal(kg, (cout,), jnp.float32)
    beta = 0.1 * jax.random.normal(kb, (cout,), jnp.float32)
    s = gamma / jnp.sqrt(1.0 + _EPS)      # running_var = 1, running_mean = 0 (eval mode)
    return {'W': W, 'sb': jnp.stack([s, beta], axis=0)}


def init_conv_bias(key, cin, cout):
    """ConvModule(cin, cout, 1) default cfg: conv (with bias) + ReLU (no norm)."""
    kw, kb = jax.random.split(key, 2)
    W = jax.random.normal(kw, (cin, cout), jnp.float32) / (float(cin) ** 0.5)
    bias = 0.1 * jax.random.normal(kb, (cout,), jnp.float32)
    return {'W': W, 'sb': jnp.stack([jnp.ones((cout,), jnp.float32), bias], axis=0)}


def init_la_conv(key, cin, cout):
    kw, kb = jax.random.split(key, 2)
    W = jax.random.normal(kw, (cin, cout), jnp.float32) / (float(cin) ** 0.5)
    bias = 0.1 * jax.random.normal(kb, (cout,), jnp.float32)
    return {'W': W, 'cb': bias.reshape(1, cout)}


def init_bn(key, c):
    kg, kb = jax.random.split(key, 2)
    gamma = 1.0 + 0.1 * jax.random.normal(kg, (c,), jnp.float32)
    beta = 0.1 * jax.random.normal(kb, (c,), jnp.float32)
    return {'sb': jnp.stack([gamma / jnp.sqrt(1.0 + _EPS), beta], axis=0)}


def init_tsa(key, C, IC):
    ks = jax.random.split(key, 7)
    return {'qp1': init_conv_bn(ks[0], C, IC), 'qp2': init_conv_bn(ks[1], IC, IC),
            'kp1': init_conv_bn(ks[2], C, IC), 'kp2': init_conv_bn(ks[3], IC, IC),
            'vp': init_conv_bn(ks[4], C, IC), 'out': init_conv_bn(ks[5], IC, C),
            'bneck': init_conv_bn(ks[6], 2 * C, C)}


def init_la(key, C, IC):
    ks = jax.random.split(key, 4)
    return {'conv1': init_la_conv(ks[0], C, IC), 'bn1': init_bn(ks[1], IC),
            'conv2': init_la_conv(ks[2], IC, C), 'bn2': init_bn(ks[3], C)}


# ------------------------------- module forward --------------------------------

def fhd_forward(params, bm, fm, ic, *, tn):
    B, N, C = bm.shape
    # fused tsm conv + TSC class-context, one HBM pass per branch
    bm_ctx = tsm_tsc(bm, params['tsm_bm']['W'], params['tsm_bm']['sb'], tn=tn)
    fm_ctx = tsm_tsc(fm, params['tsm_fm']['W'], params['tsm_fm']['sb'], tn=tn)
    # fused TSA (projections + attention + out-proj + bottleneck) + spatial-sum output
    bm_agg, bm_sum = tsa(bm, bm_ctx, params['tsa_bm'], tn=tn, ic=ic)
    fm_agg, fm_sum = tsa(fm, fm_ctx, params['tsa_fm'], tn=tn, ic=ic)
    pooled = (bm_sum + fm_sum) / float(N)      # AdaptiveAvgPool2d(1) of agg (tiny, XLA)
    # fused tail: agg, LA, GA, sigmoid gate, final blend
    return epilogue(bm_agg, fm_agg, pooled, params['la'], params['ga'], tn=tn)


# ------------------------------------ main --------------------------------------

if __name__ == "__main__":
    C, R = 16, 4
    IC = C // R
    B, H, W = 2, 8, 8
    N = H * W
    TN = 32                     # row tile; (8,128)-friendly and divides N
    assert N % TN == 0

    key = jax.random.PRNGKey(0)
    k_bm, k_fm, k_par = jax.random.split(key, 3)

    # torch-convention NCHW inputs, converted once to the kernel layout (B, H*W, C)
    bm_nchw = jax.random.normal(k_bm, (B, C, H, W), jnp.float32)
    fm_nchw = jax.random.normal(k_fm, (B, C, H, W), jnp.float32)
    bm = bm_nchw.transpose(0, 2, 3, 1).reshape(B, N, C)
    fm = fm_nchw.transpose(0, 2, 3, 1).reshape(B, N, C)

    ks = jax.random.split(k_par, 6)
    params = {
        'tsm_bm': init_conv_bias(ks[0], C, K_CLS),
        'tsm_fm': init_conv_bias(ks[1], C, K_CLS),
        'tsa_bm': init_tsa(ks[2], C, IC),
        'tsa_fm': init_tsa(ks[3], C, IC),
        'la': init_la(ks[4], C, IC),
        'ga': init_la(ks[5], C, IC),
    }

    diff = fhd_forward(params, bm, fm, IC, tn=TN)
    diff = jax.block_until_ready(diff)
    assert diff.shape == (B, N, C), diff.shape
    assert bool(jnp.all(jnp.isfinite(diff)))
    print("KERNEL_OK")
</pallas_src>

<mosaic_0001>
module attributes {stable_mosaic.version = 11 : i64} {
  func.func @_tsm_tsc_kernel(%arg0: i32, %arg1: i32, %arg2: memref<1x32x16xf32, #tpu.memory_space<vmem>>, %arg3: memref<16x2xf32, #tpu.memory_space<vmem>>, %arg4: memref<2x2xf32, #tpu.memory_space<vmem>>, %arg5: memref<1x2x16xf32, #tpu.memory_space<vmem>>, %arg6: memref<1x2xf32, #tpu.memory_space<vmem>>, %arg7: memref<1x2xf32, #tpu.memory_space<vmem>>, %arg8: memref<2x16xf32, #tpu.memory_space<vmem>>) attributes {dimension_semantics = [#tpu.dimension_semantics<parallel>, #tpu.dimension_semantics<arbitrary>], iteration_bounds = array<i64: 2, 2>, scalar_prefetch = 0 : i64, scratch_operands = 3 : i64, tpu.core_type = #tpu.core_type<tc>, window_params = [{transform_indices = @transform_0, window_bounds = array<i64: 1, 32, 16>}, {pipeline_mode = #tpu.pipeline_mode<synchronous>, transform_indices = @transform_1, window_bounds = array<i64: 16, 2>}, {pipeline_mode = #tpu.pipeline_mode<synchronous>, transform_indices = @transform_2, window_bounds = array<i64: 2, 2>}, {transform_indices = @transform_3, window_bounds = array<i64: 1, 2, 16>}]} {
    %c0_i32 = arith.constant 0 : i32
    %0 = arith.cmpi eq, %arg1, %c0_i32 : i32
    %1 = arith.extui %0 : i1 to i32
    %c0_i32_0 = arith.constant 0 : i32
    %2 = arith.cmpi ne, %1, %c0_i32_0 : i32
    scf.if %2 {
      %cst_30 = arith.constant 0xFF800000 : f32
      %56 = vector.broadcast %cst_30 : f32 to vector<1x2xf32>
      %c0_31 = arith.constant 0 : index
      %c0_32 = arith.constant 0 : index
      %57 = vector.load %arg6[%c0_31, %c0_32] : memref<1x2xf32, #tpu.memory_space<vmem>>, vector<1x2xf32>
      tpu.vector_store %arg6[%c0_31, %c0_32], %56 {strides = array<i32>} : memref<1x2xf32, #tpu.memory_space<vmem>>, vector<1x2xf32>,
      %cst_33 = arith.constant 0.000000e+00 : f32
      %58 = vector.broadcast %cst_33 : f32 to vector<1x2xf32>
      %c0_34 = arith.constant 0 : index
      %c0_35 = arith.constant 0 : index
      %59 = vector.load %arg7[%c0_34, %c0_35] : memref<1x2xf32, #tpu.memory_space<vmem>>, vector<1x2xf32>
      tpu.vector_store %arg7[%c0_34, %c0_35], %58 {strides = array<i32>} : memref<1x2xf32, #tpu.memory_space<vmem>>, vector<1x2xf32>,
      %cst_36 = arith.constant 0.000000e+00 : f32
      %60 = vector.broadcast %cst_36 : f32 to vector<2x16xf32>
      %c0_37 = arith.constant 0 : index
      %c0_38 = arith.constant 0 : index
      %61 = vector.load %arg8[%c0_37, %c0_38] : memref<2x16xf32, #tpu.memory_space<vmem>>, vector<2x16xf32>
      tpu.vector_store %arg8[%c0_37, %c0_38], %60 {strides = array<i32>} : memref<2x16xf32, #tpu.memory_space<vmem>>, vector<2x16xf32>,
    } else {
    }
    %c0 = arith.constant 0 : index
    %c0_1 = arith.constant 0 : index
    %c0_2 = arith.constant 0 : index
    %3 = vector.load %arg2[%c0, %c0_1, %c0_2] : memref<1x32x16xf32, #tpu.memory_space<vmem>>, vector<1x32x16xf32>
    %4 = vector.shape_cast %3 : vector<1x32x16xf32> to vector<32x16xf32>
    %c0_3 = arith.constant 0 : index
    %c0_4 = arith.constant 0 : index
    %5 = vector.load %arg3[%c0_3, %c0_4] : memref<16x2xf32, #tpu.memory_space<vmem>>, vector<16x2xf32>
    %cst = arith.constant dense<0.000000e+00> : vector<32x2xf32>
    %6 = tpu.matmul %4, %5, %cst {dimension_numbers = #tpu.dot_dimension_numbers<[1], [0], [0], [1], [0, 0, 1, 1], [], []>} : vector<32x16xf32>, vector<16x2xf32>, vector<32x2xf32> -> vector<32x2xf32>
    %c0_5 = arith.constant 0 : index
    %c0_6 = arith.constant 0 : index
    %7 = vector.load %arg4[%c0_5, %c0_6] : memref<2x2xf32, #tpu.memory_space<vmem>>, vector<1x2xf32>
    %8 = vector.broadcast %7 : vector<1x2xf32> to vector<32x2xf32>
    %9 = arith.mulf %6, %8 : vector<32x2xf32>
    %c1 = arith.constant 1 : index
    %c0_7 = arith.constant 0 : index
    %10 = vector.load %arg4[%c1, %c0_7] : memref<2x2xf32, #tpu.memory_space<vmem>>, vector<1x2xf32>
    %11 = vector.broadcast %10 : vector<1x2xf32> to vector<32x2xf32>
    %12 = arith.addf %9, %11 : vector<32x2xf32>
    %cst_8 = arith.constant 0.000000e+00 : f32
    %13 = vector.broadcast %cst_8 : f32 to vector<32x2xf32>
    %14 = arith.maximumf %12, %13 : vector<32x2xf32>
    %c0_9 = arith.constant 0 : index
    %c0_10 = arith.constant 0 : index
    %15 = vector.load %arg6[%c0_9, %c0_10] : memref<1x2xf32, #tpu.memory_space<vmem>>, vector<1x2xf32>
    %cst_11 = arith.constant dense<0xFF800000> : vector<2xf32>
    %16 = vector.multi_reduction <maximumf>, %14, %cst_11 [0] : vector<32x2xf32> to vector<2xf32>
    %17 = vector.shape_cast %16 : vector<2xf32> to vector<1x2xf32>
    %18 = arith.maximumf %15, %17 : vector<1x2xf32>
    %19 = arith.subf %15, %18 : vector<1x2xf32>
    %20 = math.exp %19 : vector<1x2xf32>
    %21 = vector.broadcast %18 : vector<1x2xf32> to vector<32x2xf32>
    %22 = arith.subf %14, %21 : vector<32x2xf32>
    %23 = math.exp %22 : vector<32x2xf32>
    %c0_12 = arith.constant 0 : index
    %c0_13 = arith.constant 0 : index
    %24 = vector.load %arg7[%c0_12, %c0_13] : memref<1x2xf32, #tpu.memory_space<vmem>>, vector<1x2xf32>
    %25 = arith.mulf %20, %24 : vector<1x2xf32>
    %cst_14 = arith.constant dense<0.000000e+00> : vector<2xf32>
    %26 = vector.multi_reduction <add>, %23, %cst_14 [0] : vector<32x2xf32> to vector<2xf32>
    %27 = vector.shape_cast %26 : vector<2xf32> to vector<1x2xf32>
    %28 = arith.addf %25, %27 : vector<1x2xf32>
    %c0_15 = arith.constant 0 : index
    %c0_16 = arith.constant 0 : index
    %29 = vector.load %arg7[%c0_15, %c0_16] : memref<1x2xf32, #tpu.memory_space<vmem>>, vector<1x2xf32>
    tpu.vector_store %arg7[%c0_15, %c0_16], %28 {strides = array<i32>} : memref<1x2xf32, #tpu.memory_space<vmem>>, vector<1x2xf32>,
    %30 = vector.extract_strided_slice %23 {offsets = [0, 0], sizes = [32, 1], strides = [1, 1]} : vector<32x2xf32> to vector<32x1xf32>
    %31 = vector.broadcast %30 : vector<32x1xf32> to vector<32x16xf32>
    %32 = arith.mulf %31, %4 : vector<32x16xf32>
    %cst_17 = arith.constant dense<0.000000e+00> : vector<16xf32>
    %33 = vector.multi_reduction <add>, %32, %cst_17 [0] : vector<32x16xf32> to vector<16xf32>
    %34 = vector.shape_cast %33 : vector<16xf32> to vector<1x16xf32>
    %35 = vector.extract_strided_slice %20 {offsets = [0, 0], sizes = [1, 1], strides = [1, 1]} : vector<1x2xf32> to vector<1x1xf32>
    %c0_18 = arith.constant 0 : index
    %c0_19 = arith.constant 0 : index
    %36 = vector.load %arg8[%c0_18, %c0_19] : memref<2x16xf32, #tpu.memory_space<vmem>>, vector<1x16xf32>
    %37 = vector.broadcast %35 : vector<1x1xf32> to vector<1x16xf32>
    %38 = arith.mulf %37, %36 : vector<1x16xf32>
    %39 = arith.addf %38, %34 : vector<1x16xf32>
    %c0_20 = arith.constant 0 : index
    %c0_21 = arith.constant 0 : index
    %40 = vector.load %arg8[%c0_20, %c0_21] : memref<2x16xf32, #tpu.memory_space<vmem>>, vector<1x16xf32>
    tpu.vector_store %arg8[%c0_20, %c0_21], %39 {strides = array<i32>} : memref<2x16xf32, #tpu.memory_space<vmem>>, vector<1x16xf32>,
    %41 = vector.extract_strided_slice %23 {offsets = [0, 1], sizes = [32, 1], strides = [1, 1]} : vector<32x2xf32> to vector<32x1xf32>
    %42 = vector.broadcast %41 : vector<32x1xf32> to vector<32x16xf32>
    %43 = arith.mulf %42, %4 : vector<32x16xf32>
    %cst_22 = arith.constant dense<0.000000e+00> : vector<16xf32>
    %44 = vector.multi_reduction <add>, %43, %cst_22 [0] : vector<32x16xf32> to vector<16xf32>
    %45 = vector.shape_cast %44 : vector<16xf32> to vector<1x16xf32>
    %46 = vector.extract_strided_slice %20 {offsets = [0, 1], sizes = [1, 1], strides = [1, 1]} : vector<1x2xf32> to vector<1x1xf32>
    %c1_23 = arith.constant 1 : index
    %c0_24 = arith.constant 0 : index
    %47 = vector.load %arg8[%c1_23, %c0_24] : memref<2x16xf32, #tpu.memory_space<vmem>>, vector<1x16xf32>
    %48 = vector.broadcast %46 : vector<1x1xf32> to vector<1x16xf32>
    %49 = arith.mulf %48, %47 : vector<1x16xf32>
    %50 = arith.addf %49, %45 : vector<1x16xf32>
    %c1_25 = arith.constant 1 : index
    %c0_26 = arith.constant 0 : index
    %51 = vector.load %arg8[%c1_25, %c0_26] : memref<2x16xf32, #tpu.memory_space<vmem>>, vector<1x16xf32>
    tpu.vector_store %arg8[%c1_25, %c0_26], %50 {strides = array<i32>} : memref<2x16xf32, #tpu.memory_space<vmem>>, vector<1x16xf32>,
    %c0_27 = arith.constant 0 : index
    %c0_28 = arith.constant 0 : index
    %52 = vector.load %arg6[%c0_27, %c0_28] : memref<1x2xf32, #tpu.memory_space<vmem>>, vector<1x2xf32>
    tpu.vector_store %arg6[%c0_27, %c0_28], %18 {strides = array<i32>} : memref<1x2xf32, #tpu.memory_space<vmem>>, vector<1x2xf32>,
    %c1_i32 = arith.constant 1 : i32
    %53 = arith.cmpi eq, %arg1, %c1_i32 : i32
    %54 = arith.extui %53 : i1 to i32
    %c0_i32_29 = arith.constant 0 : i32
    %55 = arith.cmpi ne, %54, %c0_i32_29 : i32
    scf.if %55 {
      %c0_30 = arith.constant 0 : index
      %c0_31 = arith.constant 0 : index
      %56 = vector.load %arg7[%c0_30, %c0_31] : memref<1x2xf32, #tpu.memory_space<vmem>>, vector<1x2xf32>
      %57 = tpu.reciprocal %56 {approx = true} : vector<1x2xf32> -> vector<1x2xf32>
      %c0_32 = arith.constant 0 : index
      %c0_33 = arith.constant 0 : index
      %58 = vector.load %arg8[%c0_32, %c0_33] : memref<2x16xf32, #tpu.memory_space<vmem>>, vector<1x16xf32>
      %59 = vector.extract_strided_slice %57 {offsets = [0, 0], sizes = [1, 1], strides = [1, 1]} : vector<1x2xf32> to vector<1x1xf32>
      %60 = vector.broadcast %59 : vector<1x1xf32> to vector<1x16xf32>
      %61 = arith.mulf %58, %60 : vector<1x16xf32>
      %c1_34 = arith.constant 1 : index
      %c0_35 = arith.constant 0 : index
      %62 = vector.load %arg8[%c1_34, %c0_35] : memref<2x16xf32, #tpu.memory_space<vmem>>, vector<1x16xf32>
      %63 = vector.extract_strided_slice %57 {offsets = [0, 1], sizes = [1, 1], strides = [1, 1]} : vector<1x2xf32> to vector<1x1xf32>
      %64 = vector.broadcast %63 : vector<1x1xf32> to vector<1x16xf32>
      %65 = arith.mulf %62, %64 : vector<1x16xf32>
      %66 = tpu.concatenate %61, %65 in 0 : vector<1x16xf32>, vector<1x16xf32> -> vector<2x16xf32>
      %c0_36 = arith.constant 0 : index
      %c0_37 = arith.constant 0 : index
      %c0_38 = arith.constant 0 : index
      %67 = vector.load %arg5[%c0_36, %c0_37, %c0_38] : memref<1x2x16xf32, #tpu.memory_space<vmem>>, vector<1x2x16xf32>
      %68 = vector.shape_cast %67 : vector<1x2x16xf32> to vector<2x16xf32>
      %69 = vector.shape_cast %66 : vector<2x16xf32> to vector<1x2x16xf32>
      tpu.vector_store %arg5[%c0_36, %c0_37, %c0_38], %69 {strides = array<i32>} : memref<1x2x16xf32, #tpu.memory_space<vmem>>, vector<1x2x16xf32>,
    } else {
    }
    return
  }
  func.func @transform_0(%arg0: i32, %arg1: i32) -> (i32, i32, i32) {
    %c0_i32 = arith.constant 0 : i32
    %c0_i32_0 = arith.constant 0 : i32
    return %arg0, %arg1, %c0_i32 : i32, i32, i32
  }
  func.func @transform_1(%arg0: i32, %arg1: i32) -> (i32, i32) {
    %c0_i32 = arith.constant 0 : i32
    %c0_i32_0 = arith.constant 0 : i32
    %c0_i32_1 = arith.constant 0 : i32
    return %c0_i32, %c0_i32_0 : i32, i32
  }
  func.func @transform_2(%arg0: i32, %arg1: i32) -> (i32, i32) {
    %c0_i32 = arith.constant 0 : i32
    %c0_i32_0 = arith.constant 0 : i32
    %c0_i32_1 = arith.constant 0 : i32
    return %c0_i32, %c0_i32_0 : i32, i32
  }
  func.func @transform_3(%arg0: i32, %arg1: i32) -> (i32, i32, i32) {
    %c0_i32 = arith.constant 0 : i32
    %c0_i32_0 = arith.constant 0 : i32
    %c0_i32_1 = arith.constant 0 : i32
    return %arg0, %c0_i32, %c0_i32_0 : i32, i32, i32
  }
}

</mosaic_0001>

<llo_original>
// kernel: tpu_custom_call.1
$region0: #{tpu_custom_call.1}
  #allocation0 [shape = 'u32[]', space=smem, size = 0x4, offset = 0x4, fixed_abs, tag = 'smem constant byte address 0x4 - core index']
  #allocation1 [shape = 'u32[144,128]{1,0:T(1,128)}', space=vmem, size = 0x12000, scoped, tag = 'internal scratch']
  #allocation2 [shape = 'f32[1,2]{1,0:T(1,128)}', space=vmem, size = 0x200, scoped, tag = 'scratch operand']
  #allocation3 [shape = 'f32[1,2]{1,0:T(1,128)}', space=vmem, size = 0x200, scoped, tag = 'scratch operand']
  #allocation4 [shape = 'f32[2,16]{1,0:T(2,128)}', space=vmem, size = 0x400, scoped, tag = 'scratch operand']
  %s0 = inlined_call_operand.vmem [shape: f32[2,64,16], index: 0, kind: input, shape index: {}]
  %s1 = inlined_call_operand.vmem [shape: f32[16,2], index: 1, kind: input, shape index: {}]
  %s2 = inlined_call_operand.vmem [shape: f32[2,2], index: 2, kind: input, shape index: {}]
  %s3 = inlined_call_operand.hbm [shape: f32[2,2,16], index: 3, kind: output, shape index: {}]
  %s4 = sld [smem:[#allocation0]]
  $region53: #{tpu_custom_call.1} parent=0
    _
  %s6 = ssub.s32 1, %s4
  %s7 = scalar_select 0, %s6, %s4
  $region1: #{tpu_custom_call.1} parent=0
    #allocation5 [shape = 'u8[2048]{0}', space=vmem, size = 0x800, scoped, tag = 'output window, operand 0']
    #allocation6 [shape = 's32[2]{0}', space=sflag, size = 0x8, scoped, tag = 'scoped memory for tpu_custom_call.1']
    %8 = vsyncpa [#allocation6], 0
    %s9 = scalar_lea.sflag [#allocation6], 1
    %10 = vsyncpa %s9, 0
    loop: start=0, step=1, limit=6
    $region2: #{tpu_custom_call.1} parent=1 // loop_pre_header
      _
    $region3: #{tpu_custom_call.1} parent=1 // loop_header
      %s12 = sphi 0, %s16
      %p13 = scmp.ge.s32.totalorder %s12, 6
      %s19 = sphi 0, %s31
      %s20 = sphi 0, %s27
      %s21 = sphi 0, %s19
      %s22 = sphi 0, %s20
      %s23 = sphi 0, %s21
      %s24 = sphi 0, %s22
      %s36 = sphi 0, %s38
      %s39 = sphi 0, %s36
      %s40 = sphi 0, %s39
      %s56 = sphi 0, %s40
      %s60 = sphi 0, %s60
      %s62 = sphi 0, %s60
      %s63 = sphi 0, %s62
      %s77 = sphi 0, %s63
      %s81 = sphi 0, %s81
      %s83 = sphi 0, %s81
      %s84 = sphi 0, %s83
      %s98 = sphi 0, %s84
      %s104 = sphi 0, %s106
      %s107 = sphi 0, %s104
      %s108 = sphi 0, %s107
      %s124 = sphi 0, %s108
    $region4: #{tpu_custom_call.1} parent=1 // loop_header_branch
      %15 = sbr.rel (%p13) target = $region8
    $region5: #{tpu_custom_call.1} parent=1 // loop_body
      %s17 = ssub.s32 %s12, 1
      %s18 = ssub.s32 %s12, 2
      %s25 = sadd.s32 1, %s20
      %p26 = scmp.ge.s32.totalorder %s25, 2
      %s27 = scalar_select %p26, 0, %s25
      %s28 = sadd.s32 1, %s19
      %s29 = scalar_select %p26, %s28, %s19
      %p30 = scmp.ge.s32.totalorder %s29, 2
      %s31 = scalar_select %p30, 0, %s29
      %s32 = ssub.s32 %s19, %s31
      %s33 = ssub.s32 %s20, %s27
      %s34 = sor.u32 %s32, %s33
      %p35 = scmp.eq.s32.totalorder %s34, 0
      %s37 = sadd.s32 %s36, 1
      %s38 = scalar_select %p35, %s36, %s37
      %p41 = pneg %p35
      %p42 = scmp.eq.s32.totalorder %s12, 3
      %p43 = por %p41, %p42
      %p44 = scmp.ne.s32.totalorder %s36, %s39
      %p45 = scmp.eq.s32.totalorder %s12, 0
      %p46 = por %p44, %p45
      %p47 = scmp.ne.s32.totalorder %s36, %s39
      %p48 = scmp.eq.s32.totalorder %s17, 3
      %p49 = por %p47, %p48
      %p50 = scmp.ne.s32.totalorder %s39, %s40
      %p51 = scmp.eq.s32.totalorder %s17, 0
      %p52 = por %p50, %p51
      %p53 = scmp.ne.s32.totalorder %s39, %s40
      %p54 = scmp.eq.s32.totalorder %s18, 3
      %p55 = por %p53, %p54
      %p57 = scmp.ne.s32.totalorder %s40, %s56
      %p58 = scmp.eq.s32.totalorder %s18, 0
      %p59 = por %p57, %p58
      %s61 = sadd.s32 %s60, 1
      %p64 = scmp.eq.s32.totalorder %s12, 3
      %p65 = scmp.ne.s32.totalorder %s60, %s62
      %p66 = scmp.eq.s32.totalorder %s12, 0
      %p67 = por %p65, %p66
      %p68 = scmp.ne.s32.totalorder %s60, %s62
      %p69 = scmp.eq.s32.totalorder %s17, 3
      %p70 = por %p68, %p69
      %p71 = scmp.ne.s32.totalorder %s62, %s63
      %p72 = scmp.eq.s32.totalorder %s17, 0
      %p73 = por %p71, %p72
      %p74 = scmp.ne.s32.totalorder %s62, %s63
      %p75 = scmp.eq.s32.totalorder %s18, 3
      %p76 = por %p74, %p75
      %p78 = scmp.ne.s32.totalorder %s63, %s77
      %p79 = scmp.eq.s32.totalorder %s18, 0
      %p80 = por %p78, %p79
      %s82 = sadd.s32 %s81, 1
      %p85 = scmp.eq.s32.totalorder %s12, 3
      %p86 = scmp.ne.s32.totalorder %s81, %s83
      %p87 = scmp.eq.s32.totalorder %s12, 0
      %p88 = por %p86, %p87
      %p89 = scmp.ne.s32.totalorder %s81, %s83
      %p90 = scmp.eq.s32.totalorder %s17, 3
      %p91 = por %p89, %p90
      %p92 = scmp.ne.s32.totalorder %s83, %s84
      %p93 = scmp.eq.s32.totalorder %s17, 0
      %p94 = por %p92, %p93
      %p95 = scmp.ne.s32.totalorder %s83, %s84
      %p96 = scmp.eq.s32.totalorder %s18, 3
      %p97 = por %p95, %p96
      %p99 = scmp.ne.s32.totalorder %s84, %s98
      %p100 = scmp.eq.s32.totalorder %s18, 0
      %p101 = por %p99, %p100
      %s102 = ssub.s32 %s19, %s31
      %p103 = scmp.eq.s32.totalorder %s102, 0
      %s105 = sadd.s32 %s104, 1
      %s106 = scalar_select %p103, %s104, %s105
      %p109 = pneg %p103
      %p110 = scmp.eq.s32.totalorder %s12, 3
      %p111 = por %p109, %p110
      %p112 = scmp.ne.s32.totalorder %s104, %s107
      %p113 = scmp.eq.s32.totalorder %s12, 0
      %p114 = por %p112, %p113
      %p115 = scmp.ne.s32.totalorder %s104, %s107
      %p116 = scmp.eq.s32.totalorder %s17, 3
      %p117 = por %p115, %p116
      %p118 = scmp.ne.s32.totalorder %s107, %s108
      %p119 = scmp.eq.s32.totalorder %s17, 0
      %p120 = por %p118, %p119
      %p121 = scmp.ne.s32.totalorder %s107, %s108
      %p122 = scmp.eq.s32.totalorder %s18, 3
      %p123 = por %p121, %p122
      %p125 = scmp.ne.s32.totalorder %s108, %s124
      %p126 = scmp.eq.s32.totalorder %s18, 0
      %p127 = por %p125, %p126
      %p128 = scmp.le.s32.totalorder 1, %s12
      %p129 = scmp.lt.s32.totalorder %s12, 5
      %p130 = pnand %p128, %p129
      %p131 = pneg %p130
      // Predicated region
      $region9: #{tpu_custom_call.1} parent=5 // pred_check
        _
      $region10: #{tpu_custom_call.1} parent=5 // pred_check_branch
        %133 = sbr.rel (%p130) target = $region12
      $region11: #{tpu_custom_call.1} parent=5 // pred_region
        %s134 = ssub.s32 %s12, 1
        // Predicated region
        $region13: #{tpu_custom_call.1} parent=11 // pred_check
          %p135 = pneg %p73
        $region14: #{tpu_custom_call.1} parent=11 // pred_check_branch
          %137 = sbr.rel (%p135) target = $region16
        $region15: #{tpu_custom_call.1} parent=11 // pred_region
          _
        $region16: #{tpu_custom_call.1} parent=11 // pred_fallthru
          _
        // Predicated region
        $region17: #{tpu_custom_call.1} parent=11 // pred_check
          %p138 = pneg %p94
        $region18: #{tpu_custom_call.1} parent=11 // pred_check_branch
          %140 = sbr.rel (%p138) target = $region20
        $region19: #{tpu_custom_call.1} parent=11 // pred_region
          _
        $region20: #{tpu_custom_call.1} parent=11 // pred_fallthru
          _
      $region12: #{tpu_custom_call.1} parent=5 // pred_fallthru
        _
      %p141 = scmp.lt.s32.totalorder %s12, 4
      // Predicated region
      $region21: #{tpu_custom_call.1} parent=5 // pred_check
        %p142 = pneg %p141
      $region22: #{tpu_custom_call.1} parent=5 // pred_check_branch
        %144 = sbr.rel (%p142) target = $region24
      $region23: #{tpu_custom_call.1} parent=5 // pred_region
        // Predicated region
        $region25: #{tpu_custom_call.1} parent=23 // pred_check
          %p145 = pneg %p46
        $region26: #{tpu_custom_call.1} parent=23 // pred_check_branch
          %147 = sbr.rel (%p145) target = $region28
        $region27: #{tpu_custom_call.1} parent=23 // pred_region
          %s148 = smul.u32 4, %s20
          %p149 = scmp.lt.s32.totalorder %s19, 1
          %s150 = scalar_select %p149, %s19, 1
          %p151 = scmp.lt.s32.totalorder %s148, 7
          %s152 = scalar_select %p151, %s148, 7
          %s153 = smul.addr %s150, 8
          %s154 = sadd.s32 %s152, %s153
          %s155 = smul.addr %s154, 8
          %s156 = scalar_lea.vmem %s0, %s155
          %s157 = smul.u32 4, %s20
        $region28: #{tpu_custom_call.1} parent=23 // pred_fallthru
          _
      $region24: #{tpu_custom_call.1} parent=5 // pred_fallthru
        _
      %p158 = scmp.le.s32.totalorder 1, %s12
      %p159 = scmp.lt.s32.totalorder %s12, 5
      %p160 = pnand %p158, %p159
      %p161 = pneg %p160
      // Predicated region
      $region29: #{tpu_custom_call.1} parent=5 // pred_check
        _
      $region30: #{tpu_custom_call.1} parent=5 // pred_check_branch
        %163 = sbr.rel (%p160) target = $region32
      $region31: #{tpu_custom_call.1} parent=5 // pred_region
        %s164 = ssub.s32 %s12, 1
        %s165 = smul.u32 4, %s22
        %p166 = scmp.lt.s32.totalorder %s21, 1
        %s167 = scalar_select %p166, %s21, 1
        %p168 = scmp.lt.s32.totalorder %s165, 7
        %s169 = scalar_select %p168, %s165, 7
        %s170 = smul.addr %s167, 8
        %s171 = sadd.s32 %s169, %s170
        %s172 = smul.addr %s171, 8
        %s173 = scalar_lea.vmem %s0, %s172
        %p174 = pneg %p52
        %p175 = pneg %p49
        %p176 = pneg %p73
        %p177 = pneg %p70
        %p178 = pneg %p94
        %p179 = pneg %p91
        %p180 = pneg %p120
        %p181 = pneg %p117
        %s182 = sand.u32 %s107, 1
        %s183 = scalar_lea.sflag [#allocation6], %s182
        %s184 = sand.u32 %s107, 1
        %s185 = smul.addr %s184, 2
        %s186 = scalar_lea.vmem [#allocation5], %s185
        %s187 = smul.u32 4, %s22
        %p188 = scmp.lt.s32.totalorder %s21, 1
        %s189 = scalar_select %p188, %s21, 1
        %p190 = scmp.lt.s32.totalorder %s187, 7
        %s191 = scalar_select %p190, %s187, 7
        %s192 = smul.addr %s189, 8
        %s193 = sadd.s32 %s191, %s192
        %s194 = smul.addr %s193, 8
        %s195 = scalar_lea.vmem %s0, %s194
        %s196 = smul.u32 4, %s22
        %p197 = scmp.eq.s32.totalorder %s22, 0
        // Predicated region
        $region33: #{tpu_custom_call.1} parent=31 // pred_check
          %p198 = pneg %p197
        $region34: #{tpu_custom_call.1} parent=31 // pred_check_branch
          %200 = sbr.rel (%p198) target = $region36
        $region35: #{tpu_custom_call.1} parent=31 // pred_region
          %vm201 = vcmask 8192
          %202 = vst.msk [vmem:[#allocation2] sm:$0x1] %vm201, -inf
          %203 = vst.msk [vmem:[#allocation3] sm:$0x1] %vm201, 0.0
          %vm204 = vcmask 123904
          %205 = vst.msk [vmem:[#allocation4] sm:$0x3] %vm204, 0.0
        $region36: #{tpu_custom_call.1} parent=31 // pred_fallthru
          _
        %v206 = vld [vmem:[%s195] sm:$0xff]
        %v207 = vld [vmem:[%s195 + $0x8] sm:$0xff]
        %v208 = vld [vmem:[%s195 + $0x10] sm:$0xff]
        %v209 = vld [vmem:[%s195 + $0x18] sm:$0xff]
        %v210 = vld [vmem:[%s1] sm:$0xff]
        %v211 = vld [vmem:[%s1 + $0x8] sm:$0xff]
        %vm212 = vcmask 130048
        %v214 = vsel %vm212, %v206, 0
        %v217 = vsel %vm212, %v207, 0
        %v220 = vsel %vm212, %v208, 0
        %v223 = vsel %vm212, %v209, 0
        %225 = vmatprep.subr.mxu0 0.0
        %226 = vmatpush1.msra.mxu0 %v210
        %227 = vmatprep.subr.mxu0 0.0
        %228 = vmatpush1.msra.mxu0 %v211
        %229 = vmatprep.subr.mxu0 0.0
        %230 = vmatpush1.msra.mxu0 0.0
        %231 = vmatprep.subr.mxu0 0.0
        %232 = vmatpush1.msra.mxu0 0.0
        %233 = vmatprep.subr.mxu0 0.0
        %234 = vmatpush1.msra.mxu0 0.0
        %235 = vmatprep.subr.mxu0 0.0
        %236 = vmatpush1.msra.mxu0 0.0
        %237 = vmatprep.subr.mxu0 0.0
        %238 = vmatpush1.msra.mxu0 0.0
        %239 = vmatprep.subr.mxu0 0.0
        %240 = vmatpush1.msra.mxu0 0.0
        %241 = vmatprep.subr.mxu0 0.0
        %242 = vmatpush1.msra.mxu0 0.0
        %243 = vmatprep.subr.mxu0 0.0
        %244 = vmatpush1.msra.mxu0 0.0
        %245 = vmatprep.subr.mxu0 0.0
        %246 = vmatpush1.msra.mxu0 0.0
        %247 = vmatprep.subr.mxu0 0.0
        %248 = vmatpush1.msra.mxu0 0.0
        %249 = vmatprep.subr.mxu0 0.0
        %250 = vmatpush1.msra.mxu0 0.0
        %251 = vmatprep.subr.mxu0 0.0
        %252 = vmatpush1.msra.mxu0 0.0
        %253 = vmatprep.subr.mxu0 0.0
        %254 = vmatpush1.msra.mxu0 0.0
        %255 = vmatprep.subr.mxu0 0.0
        %256 = vmatpush1.msra.mxu0 0.0
        %257 = vmatprep.subr.mxu0 0.0
        %258 = vmatpush1.msra.mxu0 0.0
        %259 = vmatprep.subr.mxu0 0.0
        %260 = vmatpush1.msra.mxu0 0.0
        %261 = vmatprep.subr.mxu0 0.0
        %262 = vmatpush1.msra.mxu0 0.0
        %263 = vmatprep.subr.mxu0 0.0
        %264 = vmatpush1.msra.mxu0 0.0
        %265 = vmatprep.subr.mxu0 0.0
        %266 = vmatpush1.msra.mxu0 0.0
        %267 = vmatprep.subr.mxu0 0.0
        %268 = vmatpush1.msra.mxu0 0.0
        %269 = vmatprep.subr.mxu0 0.0
        %270 = vmatpush1.msra.mxu0 0.0
        %271 = vmatprep.subr.mxu0 0.0
        %272 = vmatpush1.msra.mxu0 0.0
        %273 = vmatprep.subr.mxu0 0.0
        %274 = vmatpush1.msra.mxu0 0.0
        %275 = vmatprep.subr.mxu0 0.0
        %276 = vmatpush1.msra.mxu0 0.0
        %277 = vmatprep.subr.mxu0 0.0
        %278 = vmatpush1.msra.mxu0 0.0
        %279 = vmatprep.subr.mxu0 0.0
        %280 = vmatpush1.msra.mxu0 0.0
        %281 = vmatprep.subr.mxu0 0.0
        %282 = vmatpush1.msra.mxu0 0.0
        %283 = vmatprep.subr.mxu0 0.0
        %284 = vmatpush1.msra.mxu0 0.0
        %285 = vmatprep.subr.mxu0 0.0
        %286 = vmatpush1.msra.mxu0 0.0
        %287 = vmatprep.subr.mxu0 0.0
        %288 = vmatpush1.msra.mxu0 0.0
        %289 = vmatprep.mubr.f32.mxu0 0.0
        %290 = vmatmul.mubr.f32.gmra.mrb[0].mxu0 %v214
        %v291 = vpop.f32.mrb[0].mxu0
        %v292 = vadd.f32 0.0, %v291
        %v293 = vpop.f32.mrb[0].mxu0
        %294 = vmatprep.mubr.f32.mxu0 0.0
        %295 = vmatmul.mubr.f32.gmra.mrb[0].mxu0 %v217
        %v296 = vpop.f32.mrb[0].mxu0
        %v297 = vadd.f32 0.0, %v296
        %v298 = vpop.f32.mrb[0].mxu0
        %299 = vmatprep.mubr.f32.mxu0 0.0
        %300 = vmatmul.mubr.f32.gmra.mrb[0].mxu0 %v220
        %v301 = vpop.f32.mrb[0].mxu0
        %v302 = vadd.f32 0.0, %v301
        %v303 = vpop.f32.mrb[0].mxu0
        %304 = vmatprep.mubr.f32.mxu0 0.0
        %305 = vmatmul.mubr.f32.gmra.mrb[0].mxu0 %v223
        %v306 = vpop.f32.mrb[0].mxu0
        %v307 = vadd.f32 0.0, %v306
        %v308 = vpop.f32.mrb[0].mxu0
        %309 = vdwg.mxu0
        %v310 = vld [vmem:[%s2] sm:$0x1]
        %v311 = vlaneseq
        %v312 = vshrl.u32 %v311, 7
        %v313 = vsub.s32 0, %v312
        %v314 = vrot.slane %v310, %v313
        %v315 = vmul.f32 %v292, %v314
        %v316 = vmul.f32 %v297, %v314
        %v317 = vmul.f32 %v302, %v314
        %v318 = vmul.f32 %v307, %v314
        %v319 = vld [vmem:[%s2 + $0x1] sm:$0x1]
        %v320 = vlaneseq
        %v321 = vshrl.u32 %v320, 7
        %v322 = vsub.s32 0, %v321
        %v323 = vrot.slane %v319, %v322
        %v324 = vadd.f32 %v315, %v323
        %v325 = vadd.f32 %v316, %v323
        %v326 = vadd.f32 %v317, %v323
        %v327 = vadd.f32 %v318, %v323
        %v328 = vmax.f32 %v324, 0.0
        %v329 = vmax.f32 %v325, 0.0
        %v330 = vmax.f32 %v326, 0.0
        %v331 = vmax.f32 %v327, 0.0
        %v332 = vld [vmem:[#allocation2] sm:$0x1]
        %vm333 = vcmask 15360
        %v334 = vsel %vm333, %v328, -inf
        %v335 = vsel %vm333, %v329, -inf
        %v336 = vsel %vm333, %v330, -inf
        %v337 = vsel %vm333, %v331, -inf
        %v338 = vmax.f32 %v334, %v335
        %v339 = vmax.f32 %v336, %v337
        %v340 = vmax.f32 %v338, %v339
        %v341 = vrot.slane %v340, 4
        %v342 = vmax.f32 %v340, %v341
        %v343 = vrot.slane %v342, 2
        %v344 = vmax.f32 %v342, %v343
        %v345 = vrot.slane %v344, 1
        %v346 = vmax.f32 %v344, %v345
        %v347 = vmax.f32 %v332, %v346
        %v348 = vsub.f32 %v332, %v347
        %v349 = vmul.f32 %v348, 1.442695
        %v350 = vpow.pop %v349
        %v352 = vlaneseq
        %v353 = vshrl.u32 %v352, 7
        %v354 = vsub.s32 0, %v353
        %v355 = vrot.slane %v347, %v354
        %v357 = vsub.f32 %v328, %v355
        %v358 = vsub.f32 %v329, %v355
        %v359 = vsub.f32 %v330, %v355
        %v360 = vsub.f32 %v331, %v355
        %v361 = vmul.f32 %v357, 1.442695
        %v362 = vpow.pop %v361
        %v363 = vmul.f32 %v358, 1.442695
        %v364 = vpow.pop %v363
        %v365 = vmul.f32 %v359, 1.442695
        %v366 = vpow.pop %v365
        %v367 = vmul.f32 %v360, 1.442695
        %v368 = vpow.pop %v367
        %v369 = vld [vmem:[#allocation3] sm:$0x1]
        %v370 = vmul.f32 %v350, %v369
        %v371 = vsel %vm333, %v362, 0.0
        %v372 = vsel %vm333, %v364, 0.0
        %v373 = vadd.f32 %v371, %v372
        %v374 = vsel %vm333, %v366, 0.0
        %v375 = vadd.f32 %v373, %v374
        %v376 = vsel %vm333, %v368, 0.0
        %v377 = vadd.f32 %v375, %v376
        %v378 = vrot.slane %v377, 4
        %v379 = vadd.f32 %v377, %v378
        %v380 = vrot.slane %v379, 2
        %v381 = vadd.f32 %v379, %v380
        %v382 = vrot.slane %v381, 1
        %v383 = vadd.f32 %v381, %v382
        %v384 = vadd.f32 %v370, %v383
        %vm385 = vcmask 8192
        %386 = vst.msk [vmem:[#allocation3] sm:$0x1] %vm385, %v384
        %388 = vset.pattern.permute.xlu0 0
        %389 = vperm.xlu0 %388, %v362
        %v390 = vpop.permute.xlu0 %389
        %393 = vset.pattern.permute.xlu0 0
        %394 = vperm.xlu0 %393, %v364
        %v395 = vpop.permute.xlu0 %394
        %398 = vset.pattern.permute.xlu0 0
        %399 = vperm.xlu0 %398, %v366
        %v400 = vpop.permute.xlu0 %399
        %403 = vset.pattern.permute.xlu0 0
        %404 = vperm.xlu0 %403, %v368
        %v405 = vpop.permute.xlu0 %404
        %v407 = vmul.f32 %v390, %v206
        %v408 = vmul.f32 %v395, %v207
        %v409 = vmul.f32 %v400, %v208
        %v410 = vmul.f32 %v405, %v209
        %v411 = vsel %vm212, %v407, 0.0
        %v412 = vsel %vm212, %v408, 0.0
        %v413 = vadd.f32 %v411, %v412
        %v414 = vsel %vm212, %v409, 0.0
        %v415 = vadd.f32 %v413, %v414
        %v416 = vsel %vm212, %v410, 0.0
        %v417 = vadd.f32 %v415, %v416
        %v418 = vrot.slane %v417, 4
        %v419 = vadd.f32 %v417, %v418
        %v420 = vrot.slane %v419, 2
        %v421 = vadd.f32 %v419, %v420
        %v422 = vrot.slane %v421, 1
        %v423 = vadd.f32 %v421, %v422
        %v424 = vld [vmem:[#allocation4] sm:$0x1]
        %426 = vset.pattern.permute.xlu0 0
        %427 = vperm.xlu0 %426, %v350
        %v428 = vpop.permute.xlu0 %427
        %v430 = vlaneseq
        %v431 = vshrl.u32 %v430, 7
        %v432 = vsub.s32 0, %v431
        %v433 = vrot.slane %v428, %v432
        %v434 = vmul.f32 %v433, %v424
        %v435 = vadd.f32 %v434, %v423
        %vm436 = vcmask 122880
        %437 = vst.msk [vmem:[#allocation4] sm:$0x1] %vm436, %v435
        %438 = vset.pattern.permute.xlu0 1
        %439 = vperm.xlu0 %438, %v362
        %v440 = vpop.permute.xlu0 %439
        %442 = vset.pattern.permute.xlu0 1
        %443 = vperm.xlu0 %442, %v364
        %v444 = vpop.permute.xlu0 %443
        %446 = vset.pattern.permute.xlu0 1
        %447 = vperm.xlu0 %446, %v366
        %v448 = vpop.permute.xlu0 %447
        %450 = vset.pattern.permute.xlu0 1
        %451 = vperm.xlu0 %450, %v368
        %v452 = vpop.permute.xlu0 %451
        %v454 = vmul.f32 %v440, %v206
        %v455 = vmul.f32 %v444, %v207
        %v456 = vmul.f32 %v448, %v208
        %v457 = vmul.f32 %v452, %v209
        %v458 = vsel %vm212, %v454, 0.0
        %v459 = vsel %vm212, %v455, 0.0
        %v460 = vadd.f32 %v458, %v459
        %v461 = vsel %vm212, %v456, 0.0
        %v462 = vadd.f32 %v460, %v461
        %v463 = vsel %vm212, %v457, 0.0
        %v464 = vadd.f32 %v462, %v463
        %v465 = vrot.slane %v464, 4
        %v466 = vadd.f32 %v464, %v465
        %v467 = vrot.slane %v466, 2
        %v468 = vadd.f32 %v466, %v467
        %v469 = vrot.slane %v468, 1
        %v470 = vadd.f32 %v468, %v469
        %v471 = vld [vmem:[#allocation4 + $0x1] sm:$0x1]
        %472 = vset.pattern.permute.xlu0 1
        %473 = vperm.xlu0 %472, %v350
        %v474 = vpop.permute.xlu0 %473
        %v476 = vlaneseq
        %v477 = vshrl.u32 %v476, 7
        %v478 = vsub.s32 0, %v477
        %v479 = vrot.slane %v474, %v478
        %v480 = vmul.f32 %v479, %v471
        %v481 = vadd.f32 %v480, %v470
        %482 = vst.msk [vmem:[#allocation4 + $0x1] sm:$0x1] %vm436, %v481
        %483 = vst.msk [vmem:[#allocation2] sm:$0x1] %vm385, %v347
        %p484 = scmp.eq.s32.totalorder %s22, 1
        // Predicated region
        $region37: #{tpu_custom_call.1} parent=31 // pred_check
          %p485 = pneg %p484
        $region38: #{tpu_custom_call.1} parent=31 // pred_check_branch
          %487 = sbr.rel (%p485) target = $region40
        $region39: #{tpu_custom_call.1} parent=31 // pred_region
          %v488 = vld [vmem:[#allocation3] sm:$0x1]
          %v489 = vrcp.pop %v488
          %v490 = vld [vmem:[#allocation4] sm:$0x1]
          %492 = vset.pattern.permute.xlu0 0
          %493 = vperm.xlu0 %492, %v489
          %v494 = vpop.permute.xlu0 %493
          %v496 = vlaneseq
          %v497 = vshrl.u32 %v496, 7
          %v498 = vsub.s32 0, %v497
          %v499 = vrot.slane %v494, %v498
          %v500 = vmul.f32 %v490, %v499
          %v501 = vld [vmem:[#allocation4 + $0x1] sm:$0x1]
          %502 = vset.pattern.permute.xlu0 1
          %503 = vperm.xlu0 %502, %v489
          %v504 = vpop.permute.xlu0 %503
          %v506 = vlaneseq
          %v507 = vshrl.u32 %v506, 7
          %v508 = vsub.s32 0, %v507
          %v509 = vrot.slane %v504, %v508
          %v510 = vmul.f32 %v501, %v509
          %v512 = vrot.slane %v510, 7
          %vm514 = vcmask 1040384
          %v515 = vsel %vm514, %v500, %v512
          %vm516 = vcmask 123904
          %517 = vst.msk [vmem:[%s186] sm:$0x3] %vm516, %v515
        $region40: #{tpu_custom_call.1} parent=31 // pred_fallthru
          _
        %s518 = sand.u32 %s107, 1
        %s519 = scalar_lea.sflag [#allocation6], %s518
        %s520 = sand.u32 %s107, 1
        %s521 = smul.addr %s520, 2
        %s522 = scalar_lea.vmem [#allocation5], %s521
        // Predicated region
        $region41: #{tpu_custom_call.1} parent=31 // pred_check
          %p523 = pneg %p117
        $region42: #{tpu_custom_call.1} parent=31 // pred_check_branch
          %525 = sbr.rel (%p523) target = $region44
        $region43: #{tpu_custom_call.1} parent=31 // pred_region
          %s527 = ssub.s32 32, 32
          %528 = vsyncadd %s519, %s527
          %s529 = smul.addr %s21, 32
          %s530 = scalar_lea.hbm %s3, %s529
          %s532 = sshll.u32 %s522, 4
          %s533 = int_to_ptr.vmem [resolvable:$true] %s532
          %535 = dma.vmem_to_hbm [thread:$0]  %s533, 32, %s530, %s519
        $region44: #{tpu_custom_call.1} parent=31 // pred_fallthru
          _
      $region32: #{tpu_custom_call.1} parent=5 // pred_fallthru
        _
      %p536 = scmp.le.s32.totalorder 2, %s12
      // Predicated region
      $region45: #{tpu_custom_call.1} parent=5 // pred_check
        %p537 = pneg %p536
      $region46: #{tpu_custom_call.1} parent=5 // pred_check_branch
        %539 = sbr.rel (%p537) target = $region48
      $region47: #{tpu_custom_call.1} parent=5 // pred_region
        %s540 = ssub.s32 %s12, 2
        // Predicated region
        $region49: #{tpu_custom_call.1} parent=47 // pred_check
          %p541 = pneg %p123
        $region50: #{tpu_custom_call.1} parent=47 // pred_check_branch
          %543 = sbr.rel (%p541) target = $region52
        $region51: #{tpu_custom_call.1} parent=47 // pred_region
          %s544 = sand.u32 %s108, 1
          %s545 = scalar_lea.sflag [#allocation6], %s544
          %s546 = sand.u32 %s108, 1
          %s547 = smul.addr %s546, 2
          %s548 = scalar_lea.vmem [#allocation5], %s547
          %549 = dma.done %s545, 32
        $region52: #{tpu_custom_call.1} parent=47 // pred_fallthru
          _
      $region48: #{tpu_custom_call.1} parent=5 // pred_fallthru
        _
    $region6: #{tpu_custom_call.1} parent=1 // loop_footer
      %s16 = sadd.s32 1, %s12
    $region7: #{tpu_custom_call.1} parent=1 // loop_footer_branch
      %11 = sbr.rel target = $region3
    $region8: #{tpu_custom_call.1} parent=1 // loop_exit
      _
    %550 = vsyncpa [#allocation6], 1
    %s551 = scalar_lea.sflag [#allocation6], 1
    %552 = vsyncpa %s551, 1

</llo_original>
